<compile_context>
chip_gen: v5e
topology: v5e:2x2
jax: 0.10.0
libtpu: 0.0.40
codegen_flags: <defaults>
</compile_context>

<pallas_src>
import functools

import jax
import jax.numpy as jnp
from jax.experimental import pallas as pl
from jax.experimental.pallas import tpu as pltpu


def _round_up(x, m):
    return (x + m - 1) // m * m


def _vmem_capacity_bytes():
    """Physical VMEM per TensorCore; conservative fallback = v7x's 64 MiB."""
    try:
        info = pltpu.get_tpu_info()
        cap = getattr(info, "vmem_capacity_bytes", None)
        if cap:
            return int(cap)
    except Exception:
        pass
    return 64 * 1024 * 1024


def gcn_prop_kernel(adj_ref, zw_ref, dinv_ref, b_ref, out_ref, acc_ref, *,
                    relu, zw_resident, tk):
    """Grid step (row-tile i, k-tile k) of  act(dinv_row * ((A+I) @ ZW) + b)."""
    k = pl.program_id(1)

    if zw_resident:
        start = pl.multiple_of(k * tk, 128)
        zw = zw_ref[pl.ds(start, tk), :]
    else:
        zw = zw_ref[...]

    # bf16 binary-Â tile @ bf16 ZW panel, f32 accumulation on the MXU.
    prod = jnp.dot(adj_ref[...], zw, preferred_element_type=jnp.float32)

    @pl.when(k == 0)
    def _():
        acc_ref[...] = prod          # direct assign: no zero-store + RMW

    @pl.when(k > 0)
    def _():
        acc_ref[...] += prod

    @pl.when(k == pl.num_programs(1) - 1)
    def _():
        y = acc_ref[...] * dinv_ref[...] + b_ref[...]
        if relu:
            y = jnp.maximum(y, 0.0)
        out_ref[...] = y.astype(out_ref.dtype)


def gcn_propagate(adj, zw, dinv_col, bias, *, relu, out_dtype, tm, tk):
    """act(dinv_col * (adj @ zw) + bias).

    adj:      [NR, NC] bf16 binary (A + I), zero-padded.
    zw:       [NC, FO] bf16, already D^{-1/2}-scaled on the source side.
    dinv_col: [NR, 1]  f32  destination-side D^{-1/2}.
    bias:     [1,  FO] f32.
    """
    nr, nc = adj.shape
    fo = zw.shape[1]
    ni, nk = nr // tm, nc // tk
    out_bytes = jnp.dtype(out_dtype).itemsize

    vmem_cap = _vmem_capacity_bytes()
    # Keep ZW fully VMEM-resident (fetched once) when comfortably small;
    # otherwise stream (tk, FO) panels over k.
    zw_resident = (nc * fo * 2) <= min(8 * 1024 * 1024, vmem_cap // 8)

    if zw_resident:
        zw_spec = pl.BlockSpec((nc, fo), lambda i, k: (0, 0))
        zw_vmem = 2 * nc * fo * 2
        zw_hbm = nc * fo * 2
    else:
        zw_spec = pl.BlockSpec((tk, fo), lambda i, k: (k, 0))
        zw_vmem = 2 * tk * fo * 2
        zw_hbm = ni * nc * fo * 2          # re-streamed once per row tile

    plan_bytes = (2 * tm * tk * 2            # Â tiles (bf16, double-buffered)
                  + zw_vmem                  # ZW operand
                  + 2 * tm * 128 * 4         # dinv tiles (lane-padded)
                  + 2 * 8 * fo * 4           # bias (sublane-padded)
                  + 2 * tm * fo * out_bytes  # output tiles
                  + tm * fo * 4)             # f32 accumulator scratch
    vmem_limit = int(min(max(2 * plan_bytes, 32 * 1024 * 1024),
                         vmem_cap - 8 * 1024 * 1024))

    cost = pl.CostEstimate(
        flops=2 * nr * nc * fo,
        transcendentals=0,
        bytes_accessed=(nr * nc * 2 + zw_hbm + nr * 4 + fo * 4
                        + nr * fo * out_bytes),
    )

    kernel = functools.partial(gcn_prop_kernel, relu=relu,
                               zw_resident=zw_resident, tk=tk)
    return pl.pallas_call(
        kernel,
        out_shape=jax.ShapeDtypeStruct((nr, fo), out_dtype),
        grid_spec=pltpu.PrefetchScalarGridSpec(
            num_scalar_prefetch=0,
            grid=(ni, nk),
            in_specs=[
                pl.BlockSpec((tm, tk), lambda i, k: (i, k)),   # Â tile (streamed)
                zw_spec,                                       # ZW (resident / k-panel)
                pl.BlockSpec((tm, 1), lambda i, k: (i, 0)),    # row D^{-1/2}
                pl.BlockSpec((1, fo), lambda i, k: (0, 0)),    # bias (resident)
            ],
            out_specs=pl.BlockSpec((tm, fo), lambda i, k: (i, 0)),
            scratch_shapes=[pltpu.VMEM((tm, fo), jnp.float32)],
        ),
        compiler_params=pltpu.CompilerParams(
            dimension_semantics=("parallel", "arbitrary"),
            vmem_limit_bytes=vmem_limit,
        ),
        cost_estimate=cost,
    )(adj, zw, dinv_col, bias)


def _tile_plan(n):
    """128-aligned tiles; big graphs stream Â in (512, 2048) bf16 tiles (4 MiB dbl-buf)."""
    if n <= 1024:
        t = _round_up(max(n, 1), 128)
        return t, t
    tm = 512
    tk = 2048 if n > 2048 else _round_up(n, 512)
    return tm, tk


def gcn_encoder(x, edge_index, w1, b1, w2, b2):
    n, _ = x.shape
    h_dim = w1.shape[1]
    c_out = w2.shape[1]

    tm, tk = _tile_plan(n)
    nr = _round_up(n, tm)
    nc = _round_up(n, tk)
    hp = _round_up(h_dim, 128)
    cp = _round_up(c_out, 128)

    # Single-pass padded bf16 binary adjacency (A + I); values {0,1} are exact in bf16.
    src, dst = edge_index[0], edge_index[1]
    adj = jnp.zeros((nr, nc), jnp.bfloat16)
    adj = adj.at[dst, src].set(1.0)                 # edge j -> i sits at adj[i, j]
    diag = jnp.arange(n)
    adj = adj.at[diag, diag].set(1.0)               # self loops (dedup-safe: set, not add)

    # Symmetric-normalization terms kept in f32, out of the bf16 stream.
    deg = jnp.sum(adj[:n, :n].astype(jnp.float32), axis=1)
    dinv = jnp.where(deg > 0.0, jax.lax.rsqrt(deg), 0.0)
    dinv_col = jnp.zeros((nr, 1), jnp.float32).at[:n, 0].set(dinv)

    def layer(z, w, b, fo_pad, relu):
        fo = w.shape[1]
        zw = jnp.dot(z.astype(jnp.float32), w)      # small GEMM: O(N*F*fo), in XLA
        zw = dinv[:, None] * zw                     # source-side D^{-1/2} (f32)
        zw_p = jnp.zeros((nc, fo_pad), jnp.bfloat16).at[:n, :fo].set(
            zw.astype(jnp.bfloat16))
        b_p = jnp.zeros((1, fo_pad), jnp.float32).at[0, :fo].set(b)
        return gcn_propagate(adj, zw_p, dinv_col, b_p, relu=relu,
                             out_dtype=jnp.float32, tm=tm, tk=tk)

    # Layer 1: relu(Â X W1 + b1); layer 2 needs the complete H -> separate call.
    h = layer(x, w1, b1, hp, relu=True)[:n, :h_dim]
    out = layer(h, w2, b2, cp, relu=False)
    return out[:n, :c_out]


def gcn_encoder_ref(x, edge_index, w1, b1, w2, b2):
    n = x.shape[0]
    src, dst = edge_index[0], edge_index[1]
    adj = jnp.zeros((n, n), jnp.float32).at[dst, src].set(1.0)
    adj = jnp.maximum(adj, jnp.eye(n, dtype=jnp.float32))   # add self loops if absent
    deg = adj.sum(axis=1)
    dinv = jnp.where(deg > 0.0, jax.lax.rsqrt(deg), 0.0)
    adj_n = dinv[:, None] * adj * dinv[None, :]
    h = jnp.maximum(adj_n @ (x @ w1) + b1[None, :], 0.0)
    return adj_n @ (h @ w2) + b2[None, :]


if __name__ == "__main__":
    num_nodes = 8
    in_channels = 4
    hidden_channels = 16

    key = jax.random.PRNGKey(0)
    kx, k1, k2 = jax.random.split(key, 3)

    # Node features [N, in_channels]
    x = jax.random.normal(kx, (num_nodes, in_channels), dtype=jnp.float32)

    # Undirected ring graph (both directions), edge_index shape [2, E]
    heads = jnp.arange(num_nodes, dtype=jnp.int32)
    tails = (heads + 1) % num_nodes
    edge_index = jnp.concatenate(
        [jnp.stack([heads, tails]), jnp.stack([tails, heads])], axis=1)  # [2, 16]

    # Deterministic glorot-style init (GCNConv: W [in, out], bias [out]).
    def glorot(k, fan_in, fan_out):
        limit = jnp.sqrt(6.0 / (fan_in + fan_out))
        return jax.random.uniform(k, (fan_in, fan_out), jnp.float32, -limit, limit)

    w1 = glorot(k1, in_channels, hidden_channels)
    b1 = jnp.zeros((hidden_channels,), jnp.float32)
    w2 = glorot(k2, hidden_channels, in_channels)
    b2 = jnp.zeros((in_channels,), jnp.float32)

    out = jax.block_until_ready(gcn_encoder(x, edge_index, w1, b1, w2, b2))
    ref = gcn_encoder_ref(x, edge_index, w1, b1, w2, b2)

    assert out.shape == (num_nodes, in_channels)
    # Binary Â is exact in bf16; only the streamed (D^{-1/2} Z W) operand is bf16-rounded
    # (f32 accumulation), so bf16-level tolerance vs the f32 reference.
    assert jnp.allclose(out, ref, atol=3e-2, rtol=3e-2), float(
        jnp.max(jnp.abs(out - ref)))

    print("KERNEL_OK")
</pallas_src>

<mosaic_0001>
module attributes {stable_mosaic.version = 11 : i64} {
  func.func @gcn_prop_kernel(%arg0: i32, %arg1: i32, %arg2: memref<128x128xbf16, #tpu.memory_space<vmem>>, %arg3: memref<128x128xbf16, #tpu.memory_space<vmem>>, %arg4: memref<128x1xf32, #tpu.memory_space<vmem>>, %arg5: memref<1x128xf32, #tpu.memory_space<vmem>>, %arg6: memref<128x128xf32, #tpu.memory_space<vmem>>, %arg7: memref<128x128xf32, #tpu.memory_space<vmem>>) attributes {dimension_semantics = [#tpu.dimension_semantics<parallel>, #tpu.dimension_semantics<arbitrary>], iteration_bounds = array<i64: 1, 1>, scalar_prefetch = 0 : i64, scratch_operands = 1 : i64, tpu.core_type = #tpu.core_type<tc>, window_params = [{transform_indices = @transform_0, window_bounds = array<i64: 128, 128>}, {pipeline_mode = #tpu.pipeline_mode<synchronous>, transform_indices = @transform_1, window_bounds = array<i64: 128, 128>}, {transform_indices = @transform_2, window_bounds = array<i64: 128, 1>}, {pipeline_mode = #tpu.pipeline_mode<synchronous>, transform_indices = @transform_3, window_bounds = array<i64: 1, 128>}, {transform_indices = @transform_4, window_bounds = array<i64: 128, 128>}]} {
    %c128_i32 = arith.constant 128 : i32
    %0 = arith.muli %arg1, %c128_i32 : i32
    %1 = tpu.assume_multiple %0, 128 : i32
    %2 = arith.index_cast %1 : i32 to index
    %c0 = arith.constant 0 : index
    %3 = vector.load %arg3[%2, %c0] : memref<128x128xbf16, #tpu.memory_space<vmem>>, vector<128x128xbf16>
    %c0_0 = arith.constant 0 : index
    %c0_1 = arith.constant 0 : index
    %4 = vector.load %arg2[%c0_0, %c0_1] : memref<128x128xbf16, #tpu.memory_space<vmem>>, vector<128x128xbf16>
    %cst = arith.constant dense<0.000000e+00> : vector<128x128xf32>
    %5 = tpu.matmul %4, %3, %cst {dimension_numbers = #tpu.dot_dimension_numbers<[1], [0], [0], [1], [0, 0, 1, 1], [], []>} : vector<128x128xbf16>, vector<128x128xbf16>, vector<128x128xf32> -> vector<128x128xf32>
    %c0_i32 = arith.constant 0 : i32
    %6 = arith.cmpi eq, %arg1, %c0_i32 : i32
    %7 = arith.extui %6 : i1 to i32
    %c0_i32_2 = arith.constant 0 : i32
    %8 = arith.cmpi ne, %7, %c0_i32_2 : i32
    scf.if %8 {
      %c0_7 = arith.constant 0 : index
      %c0_8 = arith.constant 0 : index
      %15 = vector.load %arg7[%c0_7, %c0_8] : memref<128x128xf32, #tpu.memory_space<vmem>>, vector<128x128xf32>
      tpu.vector_store %arg7[%c0_7, %c0_8], %5 {strides = array<i32>} : memref<128x128xf32, #tpu.memory_space<vmem>>, vector<128x128xf32>,
    } else {
    }
    %c0_i32_3 = arith.constant 0 : i32
    %9 = arith.cmpi sgt, %arg1, %c0_i32_3 : i32
    %10 = arith.extui %9 : i1 to i32
    %c0_i32_4 = arith.constant 0 : i32
    %11 = arith.cmpi ne, %10, %c0_i32_4 : i32
    scf.if %11 {
      %c0_7 = arith.constant 0 : index
      %c0_8 = arith.constant 0 : index
      %15 = vector.load %arg7[%c0_7, %c0_8] : memref<128x128xf32, #tpu.memory_space<vmem>>, vector<128x128xf32>
      %16 = arith.addf %15, %5 : vector<128x128xf32>
      %c0_9 = arith.constant 0 : index
      %c0_10 = arith.constant 0 : index
      %17 = vector.load %arg7[%c0_9, %c0_10] : memref<128x128xf32, #tpu.memory_space<vmem>>, vector<128x128xf32>
      tpu.vector_store %arg7[%c0_9, %c0_10], %16 {strides = array<i32>} : memref<128x128xf32, #tpu.memory_space<vmem>>, vector<128x128xf32>,
    } else {
    }
    %c0_i32_5 = arith.constant 0 : i32
    %12 = arith.cmpi eq, %arg1, %c0_i32_5 : i32
    %13 = arith.extui %12 : i1 to i32
    %c0_i32_6 = arith.constant 0 : i32
    %14 = arith.cmpi ne, %13, %c0_i32_6 : i32
    scf.if %14 {
      %c0_7 = arith.constant 0 : index
      %c0_8 = arith.constant 0 : index
      %15 = vector.load %arg7[%c0_7, %c0_8] : memref<128x128xf32, #tpu.memory_space<vmem>>, vector<128x128xf32>
      %c0_9 = arith.constant 0 : index
      %c0_10 = arith.constant 0 : index
      %16 = vector.load %arg4[%c0_9, %c0_10] : memref<128x1xf32, #tpu.memory_space<vmem>>, vector<128x1xf32>
      %17 = vector.broadcast %16 : vector<128x1xf32> to vector<128x128xf32>
      %18 = arith.mulf %15, %17 : vector<128x128xf32>
      %c0_11 = arith.constant 0 : index
      %c0_12 = arith.constant 0 : index
      %19 = vector.load %arg5[%c0_11, %c0_12] : memref<1x128xf32, #tpu.memory_space<vmem>>, vector<1x128xf32>
      %20 = vector.broadcast %19 : vector<1x128xf32> to vector<128x128xf32>
      %21 = arith.addf %18, %20 : vector<128x128xf32>
      %cst_13 = arith.constant 0.000000e+00 : f32
      %22 = vector.broadcast %cst_13 : f32 to vector<128x128xf32>
      %23 = arith.maximumf %21, %22 : vector<128x128xf32>
      %c0_14 = arith.constant 0 : index
      %c0_15 = arith.constant 0 : index
      %24 = vector.load %arg6[%c0_14, %c0_15] : memref<128x128xf32, #tpu.memory_space<vmem>>, vector<128x128xf32>
      tpu.vector_store %arg6[%c0_14, %c0_15], %23 {strides = array<i32>} : memref<128x128xf32, #tpu.memory_space<vmem>>, vector<128x128xf32>,
    } else {
    }
    return
  }
  func.func @transform_0(%arg0: i32, %arg1: i32) -> (i32, i32) {
    %c0_i32 = arith.constant 0 : i32
    return %arg0, %arg1 : i32, i32
  }
  func.func @transform_1(%arg0: i32, %arg1: i32) -> (i32, i32) {
    %c0_i32 = arith.constant 0 : i32
    %c0_i32_0 = arith.constant 0 : i32
    %c0_i32_1 = arith.constant 0 : i32
    return %c0_i32, %c0_i32_0 : i32, i32
  }
  func.func @transform_2(%arg0: i32, %arg1: i32) -> (i32, i32) {
    %c0_i32 = arith.constant 0 : i32
    %c0_i32_0 = arith.constant 0 : i32
    return %arg0, %c0_i32 : i32, i32
  }
  func.func @transform_3(%arg0: i32, %arg1: i32) -> (i32, i32) {
    %c0_i32 = arith.constant 0 : i32
    %c0_i32_0 = arith.constant 0 : i32
    %c0_i32_1 = arith.constant 0 : i32
    return %c0_i32, %c0_i32_0 : i32, i32
  }
  func.func @transform_4(%arg0: i32, %arg1: i32) -> (i32, i32) {
    %c0_i32 = arith.constant 0 : i32
    %c0_i32_0 = arith.constant 0 : i32
    return %arg0, %c0_i32 : i32, i32
  }
}

</mosaic_0001>

<llo_original>
// kernel: tpu_custom_call.1
$region0: #{tpu_custom_call.1}
  #allocation0 [shape = 'u32[]', space=smem, size = 0x4, offset = 0x4, fixed_abs, tag = 'smem constant byte address 0x4 - core index']
  #allocation1 [shape = 'u32[72,128]{1,0:T(1,128)}', space=vmem, size = 0x9000, scoped, tag = 'internal scratch']
  #allocation2 [shape = 'f32[128,128]{1,0:T(8,128)}', space=vmem, size = 0x10000, scoped, tag = 'scratch operand']
  %s0 = inlined_call_operand.vmem [shape: bf16[128,128], index: 0, kind: input, shape index: {}]
  %s1 = inlined_call_operand.vmem [shape: bf16[128,128], index: 1, kind: input, shape index: {}]
  %s2 = inlined_call_operand.vmem [shape: f32[128,1], index: 2, kind: input, shape index: {}]
  %s3 = inlined_call_operand.vmem [shape: f32[1,128], index: 3, kind: input, shape index: {}]
  %s4 = inlined_call_operand.hbm [shape: f32[128,128], index: 4, kind: output, shape index: {}]
  %s5 = sld [smem:[#allocation0]]
  $region38: #{tpu_custom_call.1} parent=0
    _
  %s7 = ssub.s32 1, %s5
  %s8 = scalar_select 0, %s7, %s5
  $region1: #{tpu_custom_call.1} parent=0
    #allocation3 [shape = 'u8[65536]{0}', space=vmem, size = 0x10000, scoped, tag = 'output window, operand 0, single buffered']
    #allocation4 [shape = 's32[1]{0}', space=sflag, size = 0x4, scoped, tag = 'scoped memory for tpu_custom_call.1']
    %9 = vsyncpa [#allocation4], 0
    // Predicated region
    $region2: #{tpu_custom_call.1} parent=1 // pred_check
      _
    $region3: #{tpu_custom_call.1} parent=1 // pred_check_branch
      %11 = sbr.rel (0) target = $region5
    $region4: #{tpu_custom_call.1} parent=1 // pred_region
      _
    $region5: #{tpu_custom_call.1} parent=1 // pred_fallthru
      _
    // Predicated region
    $region6: #{tpu_custom_call.1} parent=1 // pred_check
      _
    $region7: #{tpu_custom_call.1} parent=1 // pred_check_branch
      %13 = sbr.rel (0) target = $region9
    $region8: #{tpu_custom_call.1} parent=1 // pred_region
      _
    $region9: #{tpu_custom_call.1} parent=1 // pred_fallthru
      _
    // Predicated region
    $region10: #{tpu_custom_call.1} parent=1 // pred_check
      _
    $region11: #{tpu_custom_call.1} parent=1 // pred_check_branch
      %15 = sbr.rel (0) target = $region13
    $region12: #{tpu_custom_call.1} parent=1 // pred_region
      _
    $region13: #{tpu_custom_call.1} parent=1 // pred_fallthru
      _
    // Predicated region
    $region14: #{tpu_custom_call.1} parent=1 // pred_check
      _
    $region15: #{tpu_custom_call.1} parent=1 // pred_check_branch
      %17 = sbr.rel (0) target = $region17
    $region16: #{tpu_custom_call.1} parent=1 // pred_region
      _
    $region17: #{tpu_custom_call.1} parent=1 // pred_fallthru
      _
    %s18 = smul.u32 0, 128
    %s19 = sshra.s32 %s18, 3
    %s20 = sand.u32 %s18, 7
    %s21 = smul.addr %s19, 4
    %s22 = scalar_lea.vmem %s1, %s21
    %v23 = vld [vmem:[%s22] sm:$0xf]
    %v24 = vld [vmem:[%s22 + $0x4] sm:$0xf]
    %v25 = vld [vmem:[%s22 + $0x8] sm:$0xf]
    %v26 = vld [vmem:[%s22 + $0xc] sm:$0xf]
    %v27 = vld [vmem:[%s22 + $0x10] sm:$0xf]
    %v28 = vld [vmem:[%s22 + $0x14] sm:$0xf]
    %v29 = vld [vmem:[%s22 + $0x18] sm:$0xf]
    %v30 = vld [vmem:[%s22 + $0x1c] sm:$0xf]
    %v31 = vld [vmem:[%s22 + $0x20] sm:$0xf]
    %v32 = vld [vmem:[%s22 + $0x24] sm:$0xf]
    %v33 = vld [vmem:[%s22 + $0x28] sm:$0xf]
    %v34 = vld [vmem:[%s22 + $0x2c] sm:$0xf]
    %v35 = vld [vmem:[%s22 + $0x30] sm:$0xf]
    %v36 = vld [vmem:[%s22 + $0x34] sm:$0xf]
    %v37 = vld [vmem:[%s22 + $0x38] sm:$0xf]
    %v38 = vld [vmem:[%s22 + $0x3c] sm:$0xf]
    %v39 = vld [vmem:[%s0] sm:$0xf]
    %v40 = vld [vmem:[%s0 + $0x4] sm:$0xf]
    %v41 = vld [vmem:[%s0 + $0x8] sm:$0xf]
    %v42 = vld [vmem:[%s0 + $0xc] sm:$0xf]
    %v43 = vld [vmem:[%s0 + $0x10] sm:$0xf]
    %v44 = vld [vmem:[%s0 + $0x14] sm:$0xf]
    %v45 = vld [vmem:[%s0 + $0x18] sm:$0xf]
    %v46 = vld [vmem:[%s0 + $0x1c] sm:$0xf]
    %v47 = vld [vmem:[%s0 + $0x20] sm:$0xf]
    %v48 = vld [vmem:[%s0 + $0x24] sm:$0xf]
    %v49 = vld [vmem:[%s0 + $0x28] sm:$0xf]
    %v50 = vld [vmem:[%s0 + $0x2c] sm:$0xf]
    %v51 = vld [vmem:[%s0 + $0x30] sm:$0xf]
    %v52 = vld [vmem:[%s0 + $0x34] sm:$0xf]
    %v53 = vld [vmem:[%s0 + $0x38] sm:$0xf]
    %v54 = vld [vmem:[%s0 + $0x3c] sm:$0xf]
    %v71 = vunpack.c.l.b16 %v39
    %v72 = vunpack.c.l.b16 %v40
    %v73 = vunpack.c.l.b16 %v41
    %v74 = vunpack.c.l.b16 %v42
    %v75 = vunpack.c.l.b16 %v43
    %v76 = vunpack.c.l.b16 %v44
    %v77 = vunpack.c.l.b16 %v45
    %v78 = vunpack.c.l.b16 %v46
    %v79 = vunpack.c.l.b16 %v47
    %v80 = vunpack.c.l.b16 %v48
    %v81 = vunpack.c.l.b16 %v49
    %v82 = vunpack.c.l.b16 %v50
    %v83 = vunpack.c.l.b16 %v51
    %v84 = vunpack.c.l.b16 %v52
    %v85 = vunpack.c.l.b16 %v53
    %v86 = vunpack.c.l.b16 %v54
    %v87 = vpack.c.b16 %v72, %v71
    %v88 = vpack.c.b16 %v74, %v73
    %v89 = vpack.c.b16 %v76, %v75
    %v90 = vpack.c.b16 %v78, %v77
    %v91 = vpack.c.b16 %v80, %v79
    %v92 = vpack.c.b16 %v82, %v81
    %v93 = vpack.c.b16 %v84, %v83
    %v94 = vpack.c.b16 %v86, %v85
    %v119 = vunpack.c.l.b16 %v23
    %v120 = vunpack.c.l.b16 %v24
    %v121 = vunpack.c.l.b16 %v25
    %v122 = vunpack.c.l.b16 %v26
    %v123 = vunpack.c.l.b16 %v27
    %v124 = vunpack.c.l.b16 %v28
    %v125 = vunpack.c.l.b16 %v29
    %v126 = vunpack.c.l.b16 %v30
    %v127 = vunpack.c.l.b16 %v31
    %v128 = vunpack.c.l.b16 %v32
    %v129 = vunpack.c.l.b16 %v33
    %v130 = vunpack.c.l.b16 %v34
    %v131 = vunpack.c.l.b16 %v35
    %v132 = vunpack.c.l.b16 %v36
    %v133 = vunpack.c.l.b16 %v37
    %v134 = vunpack.c.l.b16 %v38
    %v135 = vpack.c.b16 %v120, %v119
    %v136 = vpack.c.b16 %v122, %v121
    %v137 = vpack.c.b16 %v124, %v123
    %v138 = vpack.c.b16 %v126, %v125
    %v139 = vpack.c.b16 %v128, %v127
    %v140 = vpack.c.b16 %v130, %v129
    %v141 = vpack.c.b16 %v132, %v131
    %v142 = vpack.c.b16 %v134, %v133
    %151 = vmatpush.bf16.msra.mxu0 %v142
    %152 = vmatpush.bf16.msra.mxu0 %v141
    %153 = vmatpush.bf16.msra.mxu0 %v140
    %154 = vmatpush.bf16.msra.mxu0 %v139
    %155 = vmatpush.bf16.msra.mxu0 %v138
    %156 = vmatpush.bf16.msra.mxu0 %v137
    %157 = vmatpush.bf16.msra.mxu0 %v136
    %158 = vmatpush.bf16.msra.mxu0 %v135
    %159 = vmatmul.bf16.gmra.mxu0 %v87
    %v160 = vpop.f32.mrf.mxu0
    %v161 = vadd.f32 0.0, %v160
    %v162 = vpop.f32.mrf.mxu0
    %v163 = vadd.f32 0.0, %v162
    %164 = vmatmul.bf16.gmra.mxu0 %v88
    %v165 = vpop.f32.mrf.mxu0
    %v166 = vadd.f32 0.0, %v165
    %v167 = vpop.f32.mrf.mxu0
    %v168 = vadd.f32 0.0, %v167
    %169 = vmatmul.bf16.gmra.mxu0 %v89
    %v170 = vpop.f32.mrf.mxu0
    %v171 = vadd.f32 0.0, %v170
    %v172 = vpop.f32.mrf.mxu0
    %v173 = vadd.f32 0.0, %v172
    %174 = vmatmul.bf16.gmra.mxu0 %v90
    %v175 = vpop.f32.mrf.mxu0
    %v176 = vadd.f32 0.0, %v175
    %v177 = vpop.f32.mrf.mxu0
    %v178 = vadd.f32 0.0, %v177
    %179 = vmatmul.bf16.gmra.mxu0 %v91
    %v180 = vpop.f32.mrf.mxu0
    %v181 = vadd.f32 0.0, %v180
    %v182 = vpop.f32.mrf.mxu0
    %v183 = vadd.f32 0.0, %v182
    %184 = vmatmul.bf16.gmra.mxu0 %v92
    %v185 = vpop.f32.mrf.mxu0
    %v186 = vadd.f32 0.0, %v185
    %v187 = vpop.f32.mrf.mxu0
    %v188 = vadd.f32 0.0, %v187
    %189 = vmatmul.bf16.gmra.mxu0 %v93
    %v190 = vpop.f32.mrf.mxu0
    %v191 = vadd.f32 0.0, %v190
    %v192 = vpop.f32.mrf.mxu0
    %v193 = vadd.f32 0.0, %v192
    %194 = vmatmul.bf16.gmra.mxu0 %v94
    %v195 = vpop.f32.mrf.mxu0
    %v196 = vadd.f32 0.0, %v195
    %v197 = vpop.f32.mrf.mxu0
    %v198 = vadd.f32 0.0, %v197
    %199 = vdwg.mxu0
    %p200 = scmp.eq.s32.totalorder 0, 0
    // Predicated region
    $region18: #{tpu_custom_call.1} parent=1 // pred_check
      %p201 = pneg %p200
    $region19: #{tpu_custom_call.1} parent=1 // pred_check_branch
      %203 = sbr.rel (%p201) target = $region21
    $region20: #{tpu_custom_call.1} parent=1 // pred_region
      %204 = vst [vmem:[#allocation2] sm:$0xff] %v161
      %205 = vst [vmem:[#allocation2 + $0x8] sm:$0xff] %v163
      %206 = vst [vmem:[#allocation2 + $0x10] sm:$0xff] %v166
      %207 = vst [vmem:[#allocation2 + $0x18] sm:$0xff] %v168
      %208 = vst [vmem:[#allocation2 + $0x20] sm:$0xff] %v171
      %209 = vst [vmem:[#allocation2 + $0x28] sm:$0xff] %v173
      %210 = vst [vmem:[#allocation2 + $0x30] sm:$0xff] %v176
      %211 = vst [vmem:[#allocation2 + $0x38] sm:$0xff] %v178
      %212 = vst [vmem:[#allocation2 + $0x40] sm:$0xff] %v181
      %213 = vst [vmem:[#allocation2 + $0x48] sm:$0xff] %v183
      %214 = vst [vmem:[#allocation2 + $0x50] sm:$0xff] %v186
      %215 = vst [vmem:[#allocation2 + $0x58] sm:$0xff] %v188
      %216 = vst [vmem:[#allocation2 + $0x60] sm:$0xff] %v191
      %217 = vst [vmem:[#allocation2 + $0x68] sm:$0xff] %v193
      %218 = vst [vmem:[#allocation2 + $0x70] sm:$0xff] %v196
      %219 = vst [vmem:[#allocation2 + $0x78] sm:$0xff] %v198
    $region21: #{tpu_custom_call.1} parent=1 // pred_fallthru
      _
    %p220 = scmp.gt.s32.totalorder 0, 0
    // Predicated region
    $region22: #{tpu_custom_call.1} parent=1 // pred_check
      %p221 = pneg %p220
    $region23: #{tpu_custom_call.1} parent=1 // pred_check_branch
      %223 = sbr.rel (%p221) target = $region25
    $region24: #{tpu_custom_call.1} parent=1 // pred_region
      %v224 = vld [vmem:[#allocation2] sm:$0xff]
      %v225 = vld [vmem:[#allocation2 + $0x8] sm:$0xff]
      %v226 = vld [vmem:[#allocation2 + $0x10] sm:$0xff]
      %v227 = vld [vmem:[#allocation2 + $0x18] sm:$0xff]
      %v228 = vld [vmem:[#allocation2 + $0x20] sm:$0xff]
      %v229 = vld [vmem:[#allocation2 + $0x28] sm:$0xff]
      %v230 = vld [vmem:[#allocation2 + $0x30] sm:$0xff]
      %v231 = vld [vmem:[#allocation2 + $0x38] sm:$0xff]
      %v232 = vld [vmem:[#allocation2 + $0x40] sm:$0xff]
      %v233 = vld [vmem:[#allocation2 + $0x48] sm:$0xff]
      %v234 = vld [vmem:[#allocation2 + $0x50] sm:$0xff]
      %v235 = vld [vmem:[#allocation2 + $0x58] sm:$0xff]
      %v236 = vld [vmem:[#allocation2 + $0x60] sm:$0xff]
      %v237 = vld [vmem:[#allocation2 + $0x68] sm:$0xff]
      %v238 = vld [vmem:[#allocation2 + $0x70] sm:$0xff]
      %v239 = vld [vmem:[#allocation2 + $0x78] sm:$0xff]
      %v240 = vadd.f32 %v224, %v161
      %v241 = vadd.f32 %v225, %v163
      %v242 = vadd.f32 %v226, %v166
      %v243 = vadd.f32 %v227, %v168
      %v244 = vadd.f32 %v228, %v171
      %v245 = vadd.f32 %v229, %v173
      %v246 = vadd.f32 %v230, %v176
      %v247 = vadd.f32 %v231, %v178
      %v248 = vadd.f32 %v232, %v181
      %v249 = vadd.f32 %v233, %v183
      %v250 = vadd.f32 %v234, %v186
      %v251 = vadd.f32 %v235, %v188
      %v252 = vadd.f32 %v236, %v191
      %v253 = vadd.f32 %v237, %v193
      %v254 = vadd.f32 %v238, %v196
      %v255 = vadd.f32 %v239, %v198
      %256 = vst [vmem:[#allocation2] sm:$0xff] %v240
      %257 = vst [vmem:[#allocation2 + $0x8] sm:$0xff] %v241
      %258 = vst [vmem:[#allocation2 + $0x10] sm:$0xff] %v242
      %259 = vst [vmem:[#allocation2 + $0x18] sm:$0xff] %v243
      %260 = vst [vmem:[#allocation2 + $0x20] sm:$0xff] %v244
      %261 = vst [vmem:[#allocation2 + $0x28] sm:$0xff] %v245
      %262 = vst [vmem:[#allocation2 + $0x30] sm:$0xff] %v246
      %263 = vst [vmem:[#allocation2 + $0x38] sm:$0xff] %v247
      %264 = vst [vmem:[#allocation2 + $0x40] sm:$0xff] %v248
      %265 = vst [vmem:[#allocation2 + $0x48] sm:$0xff] %v249
      %266 = vst [vmem:[#allocation2 + $0x50] sm:$0xff] %v250
      %267 = vst [vmem:[#allocation2 + $0x58] sm:$0xff] %v251
      %268 = vst [vmem:[#allocation2 + $0x60] sm:$0xff] %v252
      %269 = vst [vmem:[#allocation2 + $0x68] sm:$0xff] %v253
      %270 = vst [vmem:[#allocation2 + $0x70] sm:$0xff] %v254
      %271 = vst [vmem:[#allocation2 + $0x78] sm:$0xff] %v255
    $region25: #{tpu_custom_call.1} parent=1 // pred_fallthru
      _
    // Predicated region
    $region26: #{tpu_custom_call.1} parent=1 // pred_check
      %p272 = pneg %p200
    $region27: #{tpu_custom_call.1} parent=1 // pred_check_branch
      %274 = sbr.rel (%p272) target = $region29
    $region28: #{tpu_custom_call.1} parent=1 // pred_region
      %v275 = vld [vmem:[#allocation2] sm:$0xff]
      %v276 = vld [vmem:[#allocation2 + $0x8] sm:$0xff]
      %v277 = vld [vmem:[#allocation2 + $0x10] sm:$0xff]
      %v278 = vld [vmem:[#allocation2 + $0x18] sm:$0xff]
      %v279 = vld [vmem:[#allocation2 + $0x20] sm:$0xff]
      %v280 = vld [vmem:[#allocation2 + $0x28] sm:$0xff]
      %v281 = vld [vmem:[#allocation2 + $0x30] sm:$0xff]
      %v282 = vld [vmem:[#allocation2 + $0x38] sm:$0xff]
      %v283 = vld [vmem:[#allocation2 + $0x40] sm:$0xff]
      %v284 = vld [vmem:[#allocation2 + $0x48] sm:$0xff]
      %v285 = vld [vmem:[#allocation2 + $0x50] sm:$0xff]
      %v286 = vld [vmem:[#allocation2 + $0x58] sm:$0xff]
      %v287 = vld [vmem:[#allocation2 + $0x60] sm:$0xff]
      %v288 = vld [vmem:[#allocation2 + $0x68] sm:$0xff]
      %v289 = vld [vmem:[#allocation2 + $0x70] sm:$0xff]
      %v290 = vld [vmem:[#allocation2 + $0x78] sm:$0xff]
      %v291 = vld [vmem:[%s2] sm:$0xff]
      %v292 = vld [vmem:[%s2 + $0x8] sm:$0xff]
      %v293 = vld [vmem:[%s2 + $0x10] sm:$0xff]
      %v294 = vld [vmem:[%s2 + $0x18] sm:$0xff]
      %v295 = vld [vmem:[%s2 + $0x20] sm:$0xff]
      %v296 = vld [vmem:[%s2 + $0x28] sm:$0xff]
      %v297 = vld [vmem:[%s2 + $0x30] sm:$0xff]
      %v298 = vld [vmem:[%s2 + $0x38] sm:$0xff]
      %v299 = vld [vmem:[%s2 + $0x40] sm:$0xff]
      %v300 = vld [vmem:[%s2 + $0x48] sm:$0xff]
      %v301 = vld [vmem:[%s2 + $0x50] sm:$0xff]
      %v302 = vld [vmem:[%s2 + $0x58] sm:$0xff]
      %v303 = vld [vmem:[%s2 + $0x60] sm:$0xff]
      %v304 = vld [vmem:[%s2 + $0x68] sm:$0xff]
      %v305 = vld [vmem:[%s2 + $0x70] sm:$0xff]
      %v306 = vld [vmem:[%s2 + $0x78] sm:$0xff]
      %308 = vset.pattern.permute.xlu0 0
      %309 = vperm.xlu0 %308, %v291
      %v310 = vpop.permute.xlu0 %309
      %313 = vset.pattern.permute.xlu0 0
      %314 = vperm.xlu0 %313, %v292
      %v315 = vpop.permute.xlu0 %314
      %318 = vset.pattern.permute.xlu0 0
      %319 = vperm.xlu0 %318, %v293
      %v320 = vpop.permute.xlu0 %319
      %323 = vset.pattern.permute.xlu0 0
      %324 = vperm.xlu0 %323, %v294
      %v325 = vpop.permute.xlu0 %324
      %328 = vset.pattern.permute.xlu0 0
      %329 = vperm.xlu0 %328, %v295
      %v330 = vpop.permute.xlu0 %329
      %333 = vset.pattern.permute.xlu0 0
      %334 = vperm.xlu0 %333, %v296
      %v335 = vpop.permute.xlu0 %334
      %338 = vset.pattern.permute.xlu0 0
      %339 = vperm.xlu0 %338, %v297
      %v340 = vpop.permute.xlu0 %339
      %343 = vset.pattern.permute.xlu0 0
      %344 = vperm.xlu0 %343, %v298
      %v345 = vpop.permute.xlu0 %344
      %348 = vset.pattern.permute.xlu0 0
      %349 = vperm.xlu0 %348, %v299
      %v350 = vpop.permute.xlu0 %349
      %353 = vset.pattern.permute.xlu0 0
      %354 = vperm.xlu0 %353, %v300
      %v355 = vpop.permute.xlu0 %354
      %358 = vset.pattern.permute.xlu0 0
      %359 = vperm.xlu0 %358, %v301
      %v360 = vpop.permute.xlu0 %359
      %363 = vset.pattern.permute.xlu0 0
      %364 = vperm.xlu0 %363, %v302
      %v365 = vpop.permute.xlu0 %364
      %368 = vset.pattern.permute.xlu0 0
      %369 = vperm.xlu0 %368, %v303
      %v370 = vpop.permute.xlu0 %369
      %373 = vset.pattern.permute.xlu0 0
      %374 = vperm.xlu0 %373, %v304
      %v375 = vpop.permute.xlu0 %374
      %378 = vset.pattern.permute.xlu0 0
      %379 = vperm.xlu0 %378, %v305
      %v380 = vpop.permute.xlu0 %379
      %383 = vset.pattern.permute.xlu0 0
      %384 = vperm.xlu0 %383, %v306
      %v385 = vpop.permute.xlu0 %384
      %v387 = vmul.f32 %v275, %v310
      %v388 = vmul.f32 %v276, %v315
      %v389 = vmul.f32 %v277, %v320
      %v390 = vmul.f32 %v278, %v325
      %v391 = vmul.f32 %v279, %v330
      %v392 = vmul.f32 %v280, %v335
      %v393 = vmul.f32 %v281, %v340
      %v394 = vmul.f32 %v282, %v345
      %v395 = vmul.f32 %v283, %v350
      %v396 = vmul.f32 %v284, %v355
      %v397 = vmul.f32 %v285, %v360
      %v398 = vmul.f32 %v286, %v365
      %v399 = vmul.f32 %v287, %v370
      %v400 = vmul.f32 %v288, %v375
      %v401 = vmul.f32 %v289, %v380
      %v402 = vmul.f32 %v290, %v385
      %v403 = vld [vmem:[%s3] sm:$0x1]
      %v405 = vperm.slane %v403, 0
      %v407 = vadd.f32 %v387, %v405
      %v408 = vadd.f32 %v388, %v405
      %v409 = vadd.f32 %v389, %v405
      %v410 = vadd.f32 %v390, %v405
      %v411 = vadd.f32 %v391, %v405
      %v412 = vadd.f32 %v392, %v405
      %v413 = vadd.f32 %v393, %v405
      %v414 = vadd.f32 %v394, %v405
      %v415 = vadd.f32 %v395, %v405
      %v416 = vadd.f32 %v396, %v405
      %v417 = vadd.f32 %v397, %v405
      %v418 = vadd.f32 %v398, %v405
      %v419 = vadd.f32 %v399, %v405
      %v420 = vadd.f32 %v400, %v405
      %v421 = vadd.f32 %v401, %v405
      %v422 = vadd.f32 %v402, %v405
      %v423 = vmax.f32 %v407, 0.0
      %v424 = vmax.f32 %v408, 0.0
      %v425 = vmax.f32 %v409, 0.0
      %v426 = vmax.f32 %v410, 0.0
      %v427 = vmax.f32 %v411, 0.0
      %v428 = vmax.f32 %v412, 0.0
      %v429 = vmax.f32 %v413, 0.0
      %v430 = vmax.f32 %v414, 0.0
      %v431 = vmax.f32 %v415, 0.0
      %v432 = vmax.f32 %v416, 0.0
      %v433 = vmax.f32 %v417, 0.0
      %v434 = vmax.f32 %v418, 0.0
      %v435 = vmax.f32 %v419, 0.0
      %v436 = vmax.f32 %v420, 0.0
      %v437 = vmax.f32 %v421, 0.0
      %v438 = vmax.f32 %v422, 0.0
      %439 = vst [vmem:[#allocation3] sm:$0xff] %v423
      %440 = vst [vmem:[#allocation3 + $0x8] sm:$0xff] %v424
      %441 = vst [vmem:[#allocation3 + $0x10] sm:$0xff] %v425
      %442 = vst [vmem:[#allocation3 + $0x18] sm:$0xff] %v426
      %443 = vst [vmem:[#allocation3 + $0x20] sm:$0xff] %v427
      %444 = vst [vmem:[#allocation3 + $0x28] sm:$0xff] %v428
      %445 = vst [vmem:[#allocation3 + $0x30] sm:$0xff] %v429
      %446 = vst [vmem:[#allocation3 + $0x38] sm:$0xff] %v430
      %447 = vst [vmem:[#allocation3 + $0x40] sm:$0xff] %v431
      %448 = vst [vmem:[#allocation3 + $0x48] sm:$0xff] %v432
      %449 = vst [vmem:[#allocation3 + $0x50] sm:$0xff] %v433
      %450 = vst [vmem:[#allocation3 + $0x58] sm:$0xff] %v434
      %451 = vst [vmem:[#allocation3 + $0x60] sm:$0xff] %v435
      %452 = vst [vmem:[#allocation3 + $0x68] sm:$0xff] %v436
      %453 = vst [vmem:[#allocation3 + $0x70] sm:$0xff] %v437
      %454 = vst [vmem:[#allocation3 + $0x78] sm:$0xff] %v438
    $region29: #{tpu_custom_call.1} parent=1 // pred_fallthru
      _
    // Predicated region
    $region30: #{tpu_custom_call.1} parent=1 // pred_check
      _
    $region31: #{tpu_custom_call.1} parent=1 // pred_check_branch
      %456 = sbr.rel (0) target = $region33
    $region32: #{tpu_custom_call.1} parent=1 // pred_region
      %458 = vsyncadd [#allocation4], 0
      %s459 = sshll.u32 [#allocation3], 4
      %s460 = int_to_ptr.vmem [resolvable:$true] %s459
      %s461 = sshll.u32 %s4, 4
      %s462 = int_to_ptr.hbm [resolvable:$true] %s461
      %467 = dma.vmem_to_hbm [thread:$0]  %s460, 2048, %s462, [#allocation4], 128, 128, 8
    $region33: #{tpu_custom_call.1} parent=1 // pred_fallthru
      _
    // Predicated region
    $region34: #{tpu_custom_call.1} parent=1 // pred_check
      _
    $region35: #{tpu_custom_call.1} parent=1 // pred_check_branch
      %469 = sbr.rel (0) target = $region37
    $region36: #{tpu_custom_call.1} parent=1 // pred_region
      %471 = dma.done [#allocation4], 2048
    $region37: #{tpu_custom_call.1} parent=1 // pred_fallthru
      _
    %472 = vsyncpa [#allocation4], 1

</llo_original>
